<compile_context>
chip_gen: v6e
topology: v6e:2x2x1
jax: 0.10.0
libtpu: 0.0.40
codegen_flags: <defaults>
</compile_context>

<pallas_src>
import jax
import jax.numpy as jnp
from jax.experimental import pallas as pl
from jax.experimental.pallas import tpu as pltpu


def _cat_tanh_kernel(x_ref, o_ref):
    # x_ref: (tb, F) tile of the flattened input, o_ref: (tb, 2*F) tile.
    # Elementwise tanh commutes with the duplication, so tanh once and
    # duplicate in-register; a single lane-dense store.
    t = jnp.tanh(x_ref[...]).astype(o_ref.dtype)
    o_ref[...] = jnp.concatenate([t, t], axis=1)


def _choose_tb(b, f, itemsize):
    """Largest batch tile that divides b, is a multiple of 8 (f32 sublane),
    and keeps double-buffered in+out tiles well under VMEM (v7x-safe)."""
    budget = 16 << 20  # bytes; headroom under v7x's 32 MiB scoped VMEM
    for tb in (512, 256, 128, 64, 32, 16, 8):
        if tb <= b and b % tb == 0 and 6 * tb * f * itemsize <= budget:
            return tb
    # Fall back: whole array as a single block (always legal when the block
    # shape equals the full array dims).
    return b


def model_forward(x, *, force_pallas=False):
    """x: (B, C, D) -> (B, 2*C*D), matching the PyTorch Model.forward."""
    b, c, d = x.shape
    f = c * d
    x_flat = x.reshape(b, f)  # glue: row-major flatten per batch

    # Tiny-problem fast path: XLA fuses this into a single VPU op; the Pallas
    # launch/grid-step overhead (~µs) would dwarf the work.
    if not force_pallas and b * 2 * f < 8 * 128:
        return jnp.tanh(jnp.concatenate((x_flat, x_flat), axis=1))

    tb = _choose_tb(b, f, x.dtype.itemsize)
    grid = (pl.cdiv(b, tb),)

    out = pl.pallas_call(
        _cat_tanh_kernel,
        out_shape=jax.ShapeDtypeStruct((b, 2 * f), x.dtype),
        grid=grid,
        in_specs=[pl.BlockSpec((tb, f), lambda i: (i, 0))],
        out_specs=pl.BlockSpec((tb, 2 * f), lambda i: (i, 0)),
        compiler_params=pltpu.CompilerParams(
            dimension_semantics=("parallel",),
            vmem_limit_bytes=32 * 1024 * 1024,
        ),
    )(x_flat)
    return out


if __name__ == "__main__":
    key = jax.random.PRNGKey(0)
    k_small, k_big = jax.random.split(key)

    # Spec shape from the PyTorch module: x = torch.randn(2, 2, 2).
    x_small = jax.random.normal(k_small, (2, 2, 2), dtype=jnp.float32)
    out_small = jax.block_until_ready(model_forward(x_small, force_pallas=True))
    ref_small = jnp.tanh(
        jnp.concatenate((x_small, x_small), axis=1).reshape(x_small.shape[0], -1)
    )
    assert out_small.shape == (2, 8), out_small.shape
    assert jnp.allclose(out_small, ref_small, atol=1e-6), "small-shape mismatch"

    # Larger, lane-dense shape exercising the tiled / pipelined path:
    # (64, 8, 16) -> F = 128, output (64, 256), tb = 64.
    x_big = jax.random.normal(k_big, (64, 8, 16), dtype=jnp.float32)
    out_big = jax.block_until_ready(model_forward(x_big))
    ref_big = jnp.tanh(
        jnp.concatenate((x_big, x_big), axis=1).reshape(x_big.shape[0], -1)
    )
    assert out_big.shape == (64, 256), out_big.shape
    assert jnp.allclose(out_big, ref_big, atol=1e-6), "large-shape mismatch"

    print("KERNEL_OK")
</pallas_src>

<mosaic_0001>
module attributes {stable_mosaic.version = 11 : i64} {
  func.func @_cat_tanh_kernel(%arg0: i32, %arg1: memref<2x4xf32, #tpu.memory_space<vmem>>, %arg2: memref<2x8xf32, #tpu.memory_space<vmem>>) attributes {dimension_semantics = [#tpu.dimension_semantics<parallel>], iteration_bounds = array<i64: 1>, scalar_prefetch = 0 : i64, scratch_operands = 0 : i64, tpu.core_type = #tpu.core_type<tc>, window_params = [{transform_indices = @transform_0, window_bounds = array<i64: 2, 4>}, {transform_indices = @transform_1, window_bounds = array<i64: 2, 8>}]} {
    %c0 = arith.constant 0 : index
    %c0_0 = arith.constant 0 : index
    %0 = vector.load %arg1[%c0, %c0_0] : memref<2x4xf32, #tpu.memory_space<vmem>>, vector<2x4xf32>
    %1 = math.tanh %0 : vector<2x4xf32>
    %2 = tpu.concatenate %1, %1 in 1 : vector<2x4xf32>, vector<2x4xf32> -> vector<2x8xf32>
    %c0_1 = arith.constant 0 : index
    %c0_2 = arith.constant 0 : index
    %3 = vector.load %arg2[%c0_1, %c0_2] : memref<2x8xf32, #tpu.memory_space<vmem>>, vector<2x8xf32>
    tpu.vector_store %arg2[%c0_1, %c0_2], %2 {strides = array<i32>} : memref<2x8xf32, #tpu.memory_space<vmem>>, vector<2x8xf32>,
    return
  }
  func.func @transform_0(%arg0: i32) -> (i32, i32) {
    %c0_i32 = arith.constant 0 : i32
    %c0_i32_0 = arith.constant 0 : i32
    return %arg0, %c0_i32 : i32, i32
  }
  func.func @transform_1(%arg0: i32) -> (i32, i32) {
    %c0_i32 = arith.constant 0 : i32
    %c0_i32_0 = arith.constant 0 : i32
    return %arg0, %c0_i32 : i32, i32
  }
}

</mosaic_0001>

<llo_original>
// kernel: tpu_custom_call.1
$region0: #{tpu_custom_call.1}
  #allocation0 [shape = 'u32[]', space=smem, size = 0x4, offset = 0x4, fixed_abs, tag = 'smem constant byte address 0x4 - core index']
  #allocation1 [shape = 'u32[144,128]{1,0:T(1,128)}', space=vmem, size = 0x12000, scoped, tag = 'internal scratch']
  %s0 = inlined_call_operand.hbm [shape: f32[2,4], index: 0, kind: input, shape index: {}]
  %s1 = inlined_call_operand.hbm [shape: f32[2,8], index: 1, kind: output, shape index: {}]
  %s2 = sld [smem:[#allocation0]]
  $region18: #{tpu_custom_call.1} parent=0
    _
  %s4 = ssub.s32 1, %s2
  %s5 = scalar_select 0, %s4, %s2
  $region1: #{tpu_custom_call.1} parent=0
    #allocation2 [shape = 'u8[1024]{0}', space=vmem, size = 0x400, scoped, tag = 'input window, operand 0, single buffered']
    #allocation3 [shape = 's32[1]{0}', space=sflag, size = 0x4, scoped, tag = 'scoped memory for tpu_custom_call.1']
    #allocation4 [shape = 's32[1]{0}', space=sflag, size = 0x4, scoped, tag = 'scoped memory for tpu_custom_call.1']
    #allocation5 [shape = 'u8[1024]{0}', space=vmem, size = 0x400, scoped, tag = 'output window, operand 0, single buffered']
    %6 = vsyncpa [#allocation3], 0
    %7 = vsyncpa [#allocation4], 0
    // Predicated region
    $region2: #{tpu_custom_call.1} parent=1 // pred_check
      _
    $region3: #{tpu_custom_call.1} parent=1 // pred_check_branch
      %9 = sbr.rel (0) target = $region5
    $region4: #{tpu_custom_call.1} parent=1 // pred_region
      %s11 = ssub.s32 32, 32
      %12 = vsyncadd [#allocation3], %s11
      %s14 = sshll.u32 [#allocation2], 4
      %s15 = int_to_ptr.vmem [resolvable:$true] %s14
      %17 = dma.hbm_to_vmem [thread:$0]  %s0, 32, %s15, [#allocation3]
    $region5: #{tpu_custom_call.1} parent=1 // pred_fallthru
      _
    // Predicated region
    $region6: #{tpu_custom_call.1} parent=1 // pred_check
      _
    $region7: #{tpu_custom_call.1} parent=1 // pred_check_branch
      %19 = sbr.rel (0) target = $region9
    $region8: #{tpu_custom_call.1} parent=1 // pred_region
      %20 = dma.done [#allocation3], 32
    $region9: #{tpu_custom_call.1} parent=1 // pred_fallthru
      _
    %v21 = vld [vmem:[#allocation2] sm:$0x3]
    %v22 = vtanh.pop %v21
    %24 = vrot.lane.b32.xlu0 %v22, 4
    %v25 = vpop.permute.xlu0 %24
    %vm27 = vcmask 31744
    %v28 = vsel %vm27, %v22, %v25
    %vm29 = vcmask 58368
    %30 = vst.msk [vmem:[#allocation5] sm:$0x3] %vm29, %v28
    // Predicated region
    $region10: #{tpu_custom_call.1} parent=1 // pred_check
      _
    $region11: #{tpu_custom_call.1} parent=1 // pred_check_branch
      %32 = sbr.rel (0) target = $region13
    $region12: #{tpu_custom_call.1} parent=1 // pred_region
      %s34 = ssub.s32 32, 32
      %35 = vsyncadd [#allocation4], %s34
      %s37 = sshll.u32 [#allocation5], 4
      %s38 = int_to_ptr.vmem [resolvable:$true] %s37
      %40 = dma.vmem_to_hbm [thread:$0]  %s38, 32, %s1, [#allocation4]
    $region13: #{tpu_custom_call.1} parent=1 // pred_fallthru
      _
    // Predicated region
    $region14: #{tpu_custom_call.1} parent=1 // pred_check
      _
    $region15: #{tpu_custom_call.1} parent=1 // pred_check_branch
      %42 = sbr.rel (0) target = $region17
    $region16: #{tpu_custom_call.1} parent=1 // pred_region
      %43 = dma.done [#allocation4], 32
    $region17: #{tpu_custom_call.1} parent=1 // pred_fallthru
      _
    %44 = vsyncpa [#allocation3], 1
    %45 = vsyncpa [#allocation4], 1

</llo_original>
